<compile_context>
chip_gen: v7x
topology: tpu7x:2x2x1
jax: 0.10.0
libtpu: 0.0.40
codegen_flags: <defaults>
</compile_context>

<pallas_src>
import jax
import jax.numpy as jnp
from jax import lax
from jax.experimental import pallas as pl
from jax.experimental.pallas import tpu as pltpu


def _round_up(x, m):
    return ((x + m - 1) // m) * m


def _embedbag_fc_kernel(tok_emb_ref, starts_ref, ends_ref, w_t_ref, bias_ref, out_ref):
    """One bag-tile: mean-pool gathered token embeddings (segment matmul), then fc."""
    TB = out_ref.shape[0]
    N_pad = tok_emb_ref.shape[0]

    # Per-bag [start, end) ranges for this tile.
    starts = starts_ref[...]                                   # (TB, 1) int32
    ends = ends_ref[...]                                       # (TB, 1) int32
    counts = (ends - starts).astype(jnp.float32)
    inv_counts = 1.0 / jnp.maximum(counts, 1.0)                # empty bag -> zero row (mean mode)

    # Binary bag-membership mask; exact in bf16. 1/count is applied AFTER the matmul in f32.
    pos = lax.broadcasted_iota(jnp.int32, (TB, N_pad), 1)
    mask = jnp.where((pos >= starts) & (pos < ends), 1.0, 0.0)
    seg = mask.astype(jnp.bfloat16)                            # (TB, N_pad)

    # MXU: segment-sum of token embeddings, f32 accumulation.
    pooled_sum = jnp.dot(seg, tok_emb_ref[...], preferred_element_type=jnp.float32)  # (TB, D_pad)
    pooled = pooled_sum * inv_counts                           # exact f32 mean

    # MXU: classifier matmul (bf16 operands, f32 accumulation), bias added in f32.
    logits = jnp.dot(pooled.astype(jnp.bfloat16), w_t_ref[...],
                     preferred_element_type=jnp.float32)       # (TB, C_pad)
    out_ref[...] = logits + bias_ref[...]


def prepare_params(emb_weight, fc_weight, fc_bias):
    """One-time weight prep: pad to lane-dense shapes and cast matmul operands to bf16."""
    V, D = emb_weight.shape
    C = fc_weight.shape[0]
    D_pad = _round_up(D, 128)
    C_pad = _round_up(C, 128)

    emb_p = jnp.zeros((V, D_pad), jnp.bfloat16).at[:, :D].set(emb_weight.astype(jnp.bfloat16))
    w_t_p = jnp.zeros((D_pad, C_pad), jnp.bfloat16).at[:D, :C].set(fc_weight.T.astype(jnp.bfloat16))
    bias_p = jnp.zeros((1, C_pad), jnp.float32).at[0, :C].set(fc_bias.astype(jnp.float32))
    return {"emb": emb_p, "w_t": w_t_p, "bias": bias_p, "C": C}


def language_classifier_forward(text, offsets, params):
    """text: int [N] flat token ids, offsets: int [B] bag starts. Returns f32 [B, C]."""
    emb_p, w_t_p, bias_p, C = params["emb"], params["w_t"], params["bias"], params["C"]
    V = emb_p.shape[0]
    D_pad = emb_p.shape[1]
    C_pad = w_t_p.shape[1]
    N = text.shape[0]
    B = offsets.shape[0]

    # Bag-tile size: fill the MXU M dim for big batches, no useless padding for tiny ones.
    TB = min(128, _round_up(B, 8))
    B_pad = _round_up(B, TB)
    N_pad = _round_up(max(N, 1), 128)

    # Token-embedding gather, done ONCE outside the bag-tile grid. Padded token slots
    # gather row 0 but are always masked out by the segment mask, so their values don't matter.
    text_ids = jnp.zeros((N_pad,), jnp.int32).at[:N].set(text.astype(jnp.int32))
    tok_emb = jnp.take(emb_p, jnp.clip(text_ids, 0, V - 1), axis=0)      # (N_pad, D_pad) bf16

    # Per-bag [start, end); padded bags get start=end=0 -> zero pooled rows -> bias-only rows.
    offsets32 = offsets.astype(jnp.int32)
    ends_real = jnp.concatenate([offsets32[1:], jnp.array([N], jnp.int32)])
    starts = jnp.zeros((B_pad, 1), jnp.int32).at[:B, 0].set(offsets32)
    ends = jnp.zeros((B_pad, 1), jnp.int32).at[:B, 0].set(ends_real)

    out_padded = pl.pallas_call(
        _embedbag_fc_kernel,
        out_shape=jax.ShapeDtypeStruct((B_pad, C_pad), jnp.float32),
        grid=(B_pad // TB,),
        in_specs=[
            pl.BlockSpec((N_pad, D_pad), lambda i: (0, 0)),   # gathered token embeddings (resident)
            pl.BlockSpec((TB, 1), lambda i: (i, 0)),          # bag starts for this tile
            pl.BlockSpec((TB, 1), lambda i: (i, 0)),          # bag ends for this tile
            pl.BlockSpec((D_pad, C_pad), lambda i: (0, 0)),   # fc weight^T (resident)
            pl.BlockSpec((1, C_pad), lambda i: (0, 0)),       # fc bias (resident)
        ],
        out_specs=pl.BlockSpec((TB, C_pad), lambda i: (i, 0)),
        compiler_params=pltpu.CompilerParams(
            dimension_semantics=("parallel",),                # bag tiles are independent
        ),
    )(tok_emb, starts, ends, w_t_p, bias_p)

    return out_padded[:B, :C]


def _xavier_uniform(key, shape):
    fan_out, fan_in = shape
    bound = (6.0 / (fan_in + fan_out)) ** 0.5
    return jax.random.uniform(key, shape, jnp.float32, minval=-bound, maxval=bound)


if __name__ == "__main__":
    # Small shapes consistent with the module.
    vocab_size, embed_dim, num_class = 32, 32, 8

    key = jax.random.PRNGKey(0)
    k_emb, k_fc, k_text = jax.random.split(key, 3)

    # Deterministic parameter init (mirrors init_weights: xavier_uniform + zero bias).
    emb_weight = _xavier_uniform(k_emb, (vocab_size, embed_dim))   # EmbeddingBag.weight [V, D]
    fc_weight = _xavier_uniform(k_fc, (num_class, embed_dim))      # Linear.weight [C, D]
    fc_bias = jnp.zeros((num_class,), jnp.float32)

    # Flat token ids + bag offsets (batch of 4 variable-length "sentences").
    n_tokens = 20
    text = jax.random.randint(k_text, (n_tokens,), 0, vocab_size, dtype=jnp.int32)
    offsets = jnp.array([0, 5, 9, 15], jnp.int32)  # batch = 4

    params = prepare_params(emb_weight, fc_weight, fc_bias)        # one-time prep, reused per call
    out = jax.block_until_ready(language_classifier_forward(text, offsets, params))

    # Pure-JAX f32 reference: mean-pooled EmbeddingBag + Linear.
    offsets_ext = jnp.concatenate([offsets, jnp.array([n_tokens], jnp.int32)])
    pooled_ref = jnp.stack(
        [
            jnp.mean(emb_weight[text[int(offsets_ext[b]):int(offsets_ext[b + 1])]], axis=0)
            for b in range(offsets.shape[0])
        ]
    )
    ref = pooled_ref @ fc_weight.T + fc_bias

    assert out.shape == (offsets.shape[0], num_class)
    # bf16 MXU operands (f32 accumulation / f32 mean & bias) -> ~3 significant digits.
    assert jnp.allclose(out, ref, atol=2e-2, rtol=2e-2)

    print("KERNEL_OK")
</pallas_src>

<mosaic_0001>
module attributes {stable_mosaic.version = 11 : i64} {
  func.func @_embedbag_fc_kernel(%arg0: i32, %arg1: memref<128x128xbf16, #tpu.memory_space<vmem>>, %arg2: memref<8x1xi32, #tpu.memory_space<vmem>>, %arg3: memref<8x1xi32, #tpu.memory_space<vmem>>, %arg4: memref<128x128xbf16, #tpu.memory_space<vmem>>, %arg5: memref<1x128xf32, #tpu.memory_space<vmem>>, %arg6: memref<8x128xf32, #tpu.memory_space<vmem>>) attributes {dimension_semantics = [#tpu.dimension_semantics<parallel>], iteration_bounds = array<i64: 1>, scalar_prefetch = 0 : i64, scratch_operands = 0 : i64, tpu.core_type = #tpu.core_type<tc>, window_params = [{pipeline_mode = #tpu.pipeline_mode<synchronous>, transform_indices = @transform_0, window_bounds = array<i64: 128, 128>}, {transform_indices = @transform_1, window_bounds = array<i64: 8, 1>}, {transform_indices = @transform_2, window_bounds = array<i64: 8, 1>}, {pipeline_mode = #tpu.pipeline_mode<synchronous>, transform_indices = @transform_3, window_bounds = array<i64: 128, 128>}, {pipeline_mode = #tpu.pipeline_mode<synchronous>, transform_indices = @transform_4, window_bounds = array<i64: 1, 128>}, {transform_indices = @transform_5, window_bounds = array<i64: 8, 128>}]} {
    %c0 = arith.constant 0 : index
    %c0_0 = arith.constant 0 : index
    %0 = vector.load %arg2[%c0, %c0_0] : memref<8x1xi32, #tpu.memory_space<vmem>>, vector<8x1xi32>
    %c0_1 = arith.constant 0 : index
    %c0_2 = arith.constant 0 : index
    %1 = vector.load %arg3[%c0_1, %c0_2] : memref<8x1xi32, #tpu.memory_space<vmem>>, vector<8x1xi32>
    %2 = arith.subi %1, %0 : vector<8x1xi32>
    %3 = arith.sitofp %2 : vector<8x1xi32> to vector<8x1xf32>
    %cst = arith.constant 1.000000e+00 : f32
    %4 = vector.broadcast %cst : f32 to vector<8x1xf32>
    %5 = arith.maximumf %3, %4 : vector<8x1xf32>
    %cst_3 = arith.constant 1.000000e+00 : f32
    %6 = vector.broadcast %cst_3 : f32 to vector<8x1xf32>
    %7 = arith.divf %6, %5 : vector<8x1xf32>
    %8 = tpu.iota {dimensions = array<i32: 1>} : vector<8x128xi32>
    %9 = vector.broadcast %0 : vector<8x1xi32> to vector<8x128xi32>
    %10 = arith.cmpi sge, %8, %9 : vector<8x128xi32>
    %11 = vector.broadcast %1 : vector<8x1xi32> to vector<8x128xi32>
    %12 = arith.cmpi slt, %8, %11 : vector<8x128xi32>
    %13 = arith.andi %10, %12 : vector<8x128xi1>
    %cst_4 = arith.constant 1.000000e+00 : f32
    %cst_5 = arith.constant 0.000000e+00 : f32
    %14 = vector.broadcast %cst_4 : f32 to vector<8x128xf32>
    %15 = vector.broadcast %cst_5 : f32 to vector<8x128xf32>
    %16 = arith.select %13, %14, %15 : vector<8x128xi1>, vector<8x128xf32>
    %17 = arith.truncf %16 : vector<8x128xf32> to vector<8x128xbf16>
    %c0_6 = arith.constant 0 : index
    %c0_7 = arith.constant 0 : index
    %18 = vector.load %arg1[%c0_6, %c0_7] : memref<128x128xbf16, #tpu.memory_space<vmem>>, vector<128x128xbf16>
    %cst_8 = arith.constant dense<0.000000e+00> : vector<8x128xf32>
    %19 = tpu.matmul %17, %18, %cst_8 {dimension_numbers = #tpu.dot_dimension_numbers<[1], [0], [0], [1], [0, 0, 1, 1], [], []>} : vector<8x128xbf16>, vector<128x128xbf16>, vector<8x128xf32> -> vector<8x128xf32>
    %20 = vector.broadcast %7 : vector<8x1xf32> to vector<8x128xf32>
    %21 = arith.mulf %19, %20 : vector<8x128xf32>
    %22 = arith.truncf %21 : vector<8x128xf32> to vector<8x128xbf16>
    %c0_9 = arith.constant 0 : index
    %c0_10 = arith.constant 0 : index
    %23 = vector.load %arg4[%c0_9, %c0_10] : memref<128x128xbf16, #tpu.memory_space<vmem>>, vector<128x128xbf16>
    %cst_11 = arith.constant dense<0.000000e+00> : vector<8x128xf32>
    %24 = tpu.matmul %22, %23, %cst_11 {dimension_numbers = #tpu.dot_dimension_numbers<[1], [0], [0], [1], [0, 0, 1, 1], [], []>} : vector<8x128xbf16>, vector<128x128xbf16>, vector<8x128xf32> -> vector<8x128xf32>
    %c0_12 = arith.constant 0 : index
    %c0_13 = arith.constant 0 : index
    %25 = vector.load %arg5[%c0_12, %c0_13] : memref<1x128xf32, #tpu.memory_space<vmem>>, vector<1x128xf32>
    %26 = vector.broadcast %25 : vector<1x128xf32> to vector<8x128xf32>
    %27 = arith.addf %24, %26 : vector<8x128xf32>
    %c0_14 = arith.constant 0 : index
    %c0_15 = arith.constant 0 : index
    %28 = vector.load %arg6[%c0_14, %c0_15] : memref<8x128xf32, #tpu.memory_space<vmem>>, vector<8x128xf32>
    tpu.vector_store %arg6[%c0_14, %c0_15], %27 {strides = array<i32>} : memref<8x128xf32, #tpu.memory_space<vmem>>, vector<8x128xf32>,
    return
  }
  func.func @transform_0(%arg0: i32) -> (i32, i32) {
    %c0_i32 = arith.constant 0 : i32
    %c0_i32_0 = arith.constant 0 : i32
    %c0_i32_1 = arith.constant 0 : i32
    return %c0_i32, %c0_i32_0 : i32, i32
  }
  func.func @transform_1(%arg0: i32) -> (i32, i32) {
    %c0_i32 = arith.constant 0 : i32
    %c0_i32_0 = arith.constant 0 : i32
    return %arg0, %c0_i32 : i32, i32
  }
  func.func @transform_2(%arg0: i32) -> (i32, i32) {
    %c0_i32 = arith.constant 0 : i32
    %c0_i32_0 = arith.constant 0 : i32
    return %arg0, %c0_i32 : i32, i32
  }
  func.func @transform_3(%arg0: i32) -> (i32, i32) {
    %c0_i32 = arith.constant 0 : i32
    %c0_i32_0 = arith.constant 0 : i32
    %c0_i32_1 = arith.constant 0 : i32
    return %c0_i32, %c0_i32_0 : i32, i32
  }
  func.func @transform_4(%arg0: i32) -> (i32, i32) {
    %c0_i32 = arith.constant 0 : i32
    %c0_i32_0 = arith.constant 0 : i32
    %c0_i32_1 = arith.constant 0 : i32
    return %c0_i32, %c0_i32_0 : i32, i32
  }
  func.func @transform_5(%arg0: i32) -> (i32, i32) {
    %c0_i32 = arith.constant 0 : i32
    %c0_i32_0 = arith.constant 0 : i32
    return %arg0, %c0_i32 : i32, i32
  }
}

</mosaic_0001>

<llo_original>
// kernel: tpu_custom_call.1
$region0: #{tpu_custom_call.1}
  #allocation0 [shape = 'u32[]', space=smem, size = 0x4, offset = 0x4, fixed_abs, tag = 'smem constant byte address 0x4 - core index']
  #allocation1 [shape = 'u32[144,128]{1,0:T(1,128)}', space=vmem, size = 0x12000, scoped, tag = 'internal scratch']
  %s0 = inlined_call_operand.hbm [shape: bf16[128,128], index: 0, kind: input, shape index: {}]
  %s1 = inlined_call_operand.vmem [shape: s32[8,1], index: 1, kind: input, shape index: {}]
  %s2 = inlined_call_operand.vmem [shape: s32[8,1], index: 2, kind: input, shape index: {}]
  %s3 = inlined_call_operand.hbm [shape: bf16[128,128], index: 3, kind: input, shape index: {}]
  %s4 = inlined_call_operand.vmem [shape: f32[1,128], index: 4, kind: input, shape index: {}]
  %s5 = inlined_call_operand.hbm [shape: f32[8,128], index: 5, kind: output, shape index: {}]
  %s6 = sld [smem:[#allocation0]]
  $region38: #{tpu_custom_call.1} parent=0
    _
  %s8 = ssub.s32 1, %s6
  %s9 = scalar_select 0, %s8, %s6
  $region1: #{tpu_custom_call.1} parent=0
    #allocation2 [shape = 'u8[32768]{0}', space=vmem, size = 0x8000, scoped, tag = 'input window, operand 0, single buffered']
    #allocation3 [shape = 's32[1]{0}', space=sflag, size = 0x4, scoped, tag = 'scoped memory for tpu_custom_call.1']
    #allocation4 [shape = 's32[1]{0}', space=sflag, size = 0x4, scoped, tag = 'scoped memory for tpu_custom_call.1']
    #allocation5 [shape = 'u8[32768]{0}', space=vmem, size = 0x8000, scoped, tag = 'input window, operand 3, single buffered']
    #allocation6 [shape = 's32[1]{0}', space=sflag, size = 0x4, scoped, tag = 'scoped memory for tpu_custom_call.1']
    #allocation7 [shape = 'u8[4096]{0}', space=vmem, size = 0x1000, scoped, tag = 'output window, operand 0, single buffered']
    %10 = vsyncpa [#allocation3], 0
    %11 = vsyncpa [#allocation6], 0
    %12 = vsyncpa [#allocation4], 0
    // Predicated region
    $region2: #{tpu_custom_call.1} parent=1 // pred_check
      _
    $region3: #{tpu_custom_call.1} parent=1 // pred_check_branch
      %14 = sbr.rel (0) target = $region5
    $region4: #{tpu_custom_call.1} parent=1 // pred_region
      %s16 = ssub.s32 1024, 1024
      %17 = vsyncadd [#allocation3], %s16
      %s18 = sshll.u32 [#allocation2], 4
      %s19 = int_to_ptr.vmem [resolvable:$true] %s18
      %24 = dma.hbm_to_vmem [thread:$0]  %s0, 1024, %s19, [#allocation3], 64, 64, 4
    $region5: #{tpu_custom_call.1} parent=1 // pred_fallthru
      _
    // Predicated region
    $region6: #{tpu_custom_call.1} parent=1 // pred_check
      _
    $region7: #{tpu_custom_call.1} parent=1 // pred_check_branch
      %26 = sbr.rel (0) target = $region9
    $region8: #{tpu_custom_call.1} parent=1 // pred_region
      _
    $region9: #{tpu_custom_call.1} parent=1 // pred_fallthru
      _
    // Predicated region
    $region10: #{tpu_custom_call.1} parent=1 // pred_check
      _
    $region11: #{tpu_custom_call.1} parent=1 // pred_check_branch
      %28 = sbr.rel (0) target = $region13
    $region12: #{tpu_custom_call.1} parent=1 // pred_region
      _
    $region13: #{tpu_custom_call.1} parent=1 // pred_fallthru
      _
    // Predicated region
    $region14: #{tpu_custom_call.1} parent=1 // pred_check
      _
    $region15: #{tpu_custom_call.1} parent=1 // pred_check_branch
      %30 = sbr.rel (0) target = $region17
    $region16: #{tpu_custom_call.1} parent=1 // pred_region
      %s32 = ssub.s32 1024, 1024
      %33 = vsyncadd [#allocation6], %s32
      %s34 = sshll.u32 [#allocation5], 4
      %s35 = int_to_ptr.vmem [resolvable:$true] %s34
      %40 = dma.hbm_to_vmem [thread:$0]  %s3, 1024, %s35, [#allocation6], 64, 64, 4
    $region17: #{tpu_custom_call.1} parent=1 // pred_fallthru
      _
    // Predicated region
    $region18: #{tpu_custom_call.1} parent=1 // pred_check
      _
    $region19: #{tpu_custom_call.1} parent=1 // pred_check_branch
      %42 = sbr.rel (0) target = $region21
    $region20: #{tpu_custom_call.1} parent=1 // pred_region
      _
    $region21: #{tpu_custom_call.1} parent=1 // pred_fallthru
      _
    // Predicated region
    $region22: #{tpu_custom_call.1} parent=1 // pred_check
      _
    $region23: #{tpu_custom_call.1} parent=1 // pred_check_branch
      %44 = sbr.rel (0) target = $region25
    $region24: #{tpu_custom_call.1} parent=1 // pred_region
      %45 = dma.done [#allocation3], 1024
    $region25: #{tpu_custom_call.1} parent=1 // pred_fallthru
      _
    // Predicated region
    $region26: #{tpu_custom_call.1} parent=1 // pred_check
      _
    $region27: #{tpu_custom_call.1} parent=1 // pred_check_branch
      %47 = sbr.rel (0) target = $region29
    $region28: #{tpu_custom_call.1} parent=1 // pred_region
      %48 = dma.done [#allocation6], 1024
    $region29: #{tpu_custom_call.1} parent=1 // pred_fallthru
      _
    %v50 = vld [vmem:[%s1] sm:$0xff]
    %v51 = vld [vmem:[%s2] sm:$0xff]
    %v52 = vsub.s32 %v51, %v50
    %v53 = vcvt.s32.f32 %v52
    %v54 = vmax.f32 %v53, 1.0
    %v55 = vrcp.pop %v54
    %v56 = vmul.f32 1.0, %v55
    %v57 = vlaneseq
    %v58 = vand.u32 %v57, 127
    %59 = vset.pattern.permute.xlu0 0
    %60 = vperm.xlu0 %59, %v50
    %v61 = vpop.permute.xlu0 %60
    %vm62 = vcmp.ge.s32.totalorder %v58, %v61
    %63 = vset.pattern.permute.xlu0 0
    %64 = vperm.xlu0 %63, %v51
    %v65 = vpop.permute.xlu0 %64
    %vm66 = vcmp.lt.s32.totalorder %v58, %v65
    %vm67 = vmand %vm62, %vm66
    %v68 = vsel %vm67, 1.0, 0.0
    %v69 = vpack.c.bf16 %v68, %v68
    %v70 = vld [vmem:[#allocation2] sm:$0xf]
    %v71 = vld [vmem:[#allocation2 + $0x4] sm:$0xf]
    %v72 = vld [vmem:[#allocation2 + $0x8] sm:$0xf]
    %v73 = vld [vmem:[#allocation2 + $0xc] sm:$0xf]
    %v74 = vld [vmem:[#allocation2 + $0x10] sm:$0xf]
    %v75 = vld [vmem:[#allocation2 + $0x14] sm:$0xf]
    %v76 = vld [vmem:[#allocation2 + $0x18] sm:$0xf]
    %v77 = vld [vmem:[#allocation2 + $0x1c] sm:$0xf]
    %v78 = vld [vmem:[#allocation2 + $0x20] sm:$0xf]
    %v79 = vld [vmem:[#allocation2 + $0x24] sm:$0xf]
    %v80 = vld [vmem:[#allocation2 + $0x28] sm:$0xf]
    %v81 = vld [vmem:[#allocation2 + $0x2c] sm:$0xf]
    %v82 = vld [vmem:[#allocation2 + $0x30] sm:$0xf]
    %v83 = vld [vmem:[#allocation2 + $0x34] sm:$0xf]
    %v84 = vld [vmem:[#allocation2 + $0x38] sm:$0xf]
    %v85 = vld [vmem:[#allocation2 + $0x3c] sm:$0xf]
    %v102 = vunpack.c.l.b16 %v70
    %v103 = vunpack.c.l.b16 %v71
    %v104 = vunpack.c.l.b16 %v72
    %v105 = vunpack.c.l.b16 %v73
    %v106 = vunpack.c.l.b16 %v74
    %v107 = vunpack.c.l.b16 %v75
    %v108 = vunpack.c.l.b16 %v76
    %v109 = vunpack.c.l.b16 %v77
    %v110 = vunpack.c.l.b16 %v78
    %v111 = vunpack.c.l.b16 %v79
    %v112 = vunpack.c.l.b16 %v80
    %v113 = vunpack.c.l.b16 %v81
    %v114 = vunpack.c.l.b16 %v82
    %v115 = vunpack.c.l.b16 %v83
    %v116 = vunpack.c.l.b16 %v84
    %v117 = vunpack.c.l.b16 %v85
    %v118 = vpack.c.b16 %v103, %v102
    %v119 = vpack.c.b16 %v105, %v104
    %v120 = vpack.c.b16 %v107, %v106
    %v121 = vpack.c.b16 %v109, %v108
    %v122 = vpack.c.b16 %v111, %v110
    %v123 = vpack.c.b16 %v113, %v112
    %v124 = vpack.c.b16 %v115, %v114
    %v125 = vpack.c.b16 %v117, %v116
    %134 = vmatprep.subr.bf16.mxu0 0
    %135 = vmatpush1.bf16.msra.mxu0 %v118
    %136 = vmatprep.subr.bf16.mxu0 0
    %137 = vmatpush1.bf16.msra.mxu0 %v119
    %138 = vmatprep.subr.bf16.mxu0 0
    %139 = vmatpush1.bf16.msra.mxu0 %v120
    %140 = vmatprep.subr.bf16.mxu0 0
    %141 = vmatpush1.bf16.msra.mxu0 %v121
    %142 = vmatprep.subr.bf16.mxu0 0
    %143 = vmatpush1.bf16.msra.mxu0 %v122
    %144 = vmatprep.subr.bf16.mxu0 0
    %145 = vmatpush1.bf16.msra.mxu0 %v123
    %146 = vmatprep.subr.bf16.mxu0 0
    %147 = vmatpush1.bf16.msra.mxu0 %v124
    %148 = vmatprep.subr.bf16.mxu0 0
    %149 = vmatpush1.bf16.msra.mxu0 %v125
    %150 = vmatprep.subr.bf16.mxu0 0
    %151 = vmatpush1.bf16.msra.mxu0 0
    %152 = vmatprep.subr.bf16.mxu0 0
    %153 = vmatpush1.bf16.msra.mxu0 0
    %154 = vmatprep.subr.bf16.mxu0 0
    %155 = vmatpush1.bf16.msra.mxu0 0
    %156 = vmatprep.subr.bf16.mxu0 0
    %157 = vmatpush1.bf16.msra.mxu0 0
    %158 = vmatprep.subr.bf16.mxu0 0
    %159 = vmatpush1.bf16.msra.mxu0 0
    %160 = vmatprep.subr.bf16.mxu0 0
    %161 = vmatpush1.bf16.msra.mxu0 0
    %162 = vmatprep.subr.bf16.mxu0 0
    %163 = vmatpush1.bf16.msra.mxu0 0
    %164 = vmatprep.subr.bf16.mxu0 0
    %165 = vmatpush1.bf16.msra.mxu0 0
    %166 = vmatprep.mubr.bf16.mxu0 0
    %167 = vmatmul.mubr.bf16.gmra.mrb[0].mxu0 %v69
    %v168 = vpop.f32.mrb[0].mxu0
    %v169 = vadd.f32 0.0, %v168
    %v170 = vpop.f32.mrb[0].mxu0
    %v171 = vpop.f32.mrb[0].mxu0
    %v172 = vpop.f32.mrb[0].mxu0
    %173 = vdwg.mxu0
    %175 = vset.pattern.permute.xlu0 0
    %176 = vperm.xlu0 %175, %v56
    %v177 = vpop.permute.xlu0 %176
    %v179 = vmul.f32 %v169, %v177
    %v180 = vpack.c.bf16 %v179, %v179
    %v181 = vld [vmem:[#allocation5] sm:$0xf]
    %v182 = vld [vmem:[#allocation5 + $0x4] sm:$0xf]
    %v183 = vld [vmem:[#allocation5 + $0x8] sm:$0xf]
    %v184 = vld [vmem:[#allocation5 + $0xc] sm:$0xf]
    %v185 = vld [vmem:[#allocation5 + $0x10] sm:$0xf]
    %v186 = vld [vmem:[#allocation5 + $0x14] sm:$0xf]
    %v187 = vld [vmem:[#allocation5 + $0x18] sm:$0xf]
    %v188 = vld [vmem:[#allocation5 + $0x1c] sm:$0xf]
    %v189 = vld [vmem:[#allocation5 + $0x20] sm:$0xf]
    %v190 = vld [vmem:[#allocation5 + $0x24] sm:$0xf]
    %v191 = vld [vmem:[#allocation5 + $0x28] sm:$0xf]
    %v192 = vld [vmem:[#allocation5 + $0x2c] sm:$0xf]
    %v193 = vld [vmem:[#allocation5 + $0x30] sm:$0xf]
    %v194 = vld [vmem:[#allocation5 + $0x34] sm:$0xf]
    %v195 = vld [vmem:[#allocation5 + $0x38] sm:$0xf]
    %v196 = vld [vmem:[#allocation5 + $0x3c] sm:$0xf]
    %v197 = vld [vmem:[%s4] sm:$0x1]
    %v199 = vlaneseq
    %v200 = vshrl.u32 %v199, 7
    %v201 = vsub.s32 0, %v200
    %v202 = vrot.slane %v197, %v201
    %v220 = vunpack.c.l.b16 %v181
    %v221 = vunpack.c.l.b16 %v182
    %v222 = vunpack.c.l.b16 %v183
    %v223 = vunpack.c.l.b16 %v184
    %v224 = vunpack.c.l.b16 %v185
    %v225 = vunpack.c.l.b16 %v186
    %v226 = vunpack.c.l.b16 %v187
    %v227 = vunpack.c.l.b16 %v188
    %v228 = vunpack.c.l.b16 %v189
    %v229 = vunpack.c.l.b16 %v190
    %v230 = vunpack.c.l.b16 %v191
    %v231 = vunpack.c.l.b16 %v192
    %v232 = vunpack.c.l.b16 %v193
    %v233 = vunpack.c.l.b16 %v194
    %v234 = vunpack.c.l.b16 %v195
    %v235 = vunpack.c.l.b16 %v196
    %v236 = vpack.c.b16 %v221, %v220
    %v237 = vpack.c.b16 %v223, %v222
    %v238 = vpack.c.b16 %v225, %v224
    %v239 = vpack.c.b16 %v227, %v226
    %v240 = vpack.c.b16 %v229, %v228
    %v241 = vpack.c.b16 %v231, %v230
    %v242 = vpack.c.b16 %v233, %v232
    %v243 = vpack.c.b16 %v235, %v234
    %252 = vmatprep.subr.bf16.mxu0 0
    %253 = vmatpush1.bf16.msra.mxu0 %v236
    %254 = vmatprep.subr.bf16.mxu0 0
    %255 = vmatpush1.bf16.msra.mxu0 %v237
    %256 = vmatprep.subr.bf16.mxu0 0
    %257 = vmatpush1.bf16.msra.mxu0 %v238
    %258 = vmatprep.subr.bf16.mxu0 0
    %259 = vmatpush1.bf16.msra.mxu0 %v239
    %260 = vmatprep.subr.bf16.mxu0 0
    %261 = vmatpush1.bf16.msra.mxu0 %v240
    %262 = vmatprep.subr.bf16.mxu0 0
    %263 = vmatpush1.bf16.msra.mxu0 %v241
    %264 = vmatprep.subr.bf16.mxu0 0
    %265 = vmatpush1.bf16.msra.mxu0 %v242
    %266 = vmatprep.subr.bf16.mxu0 0
    %267 = vmatpush1.bf16.msra.mxu0 %v243
    %268 = vmatprep.subr.bf16.mxu0 0
    %269 = vmatpush1.bf16.msra.mxu0 0
    %270 = vmatprep.subr.bf16.mxu0 0
    %271 = vmatpush1.bf16.msra.mxu0 0
    %272 = vmatprep.subr.bf16.mxu0 0
    %273 = vmatpush1.bf16.msra.mxu0 0
    %274 = vmatprep.subr.bf16.mxu0 0
    %275 = vmatpush1.bf16.msra.mxu0 0
    %276 = vmatprep.subr.bf16.mxu0 0
    %277 = vmatpush1.bf16.msra.mxu0 0
    %278 = vmatprep.subr.bf16.mxu0 0
    %279 = vmatpush1.bf16.msra.mxu0 0
    %280 = vmatprep.subr.bf16.mxu0 0
    %281 = vmatpush1.bf16.msra.mxu0 0
    %282 = vmatprep.subr.bf16.mxu0 0
    %283 = vmatpush1.bf16.msra.mxu0 0
    %284 = vmatprep.mubr.bf16.mxu0 0
    %285 = vmatmul.mubr.bf16.gmra.mrb[0].mxu0 %v180
    %v286 = vpop.f32.mrb[0].mxu0
    %v287 = vadd.f32 %v202, %v286
    %v288 = vpop.f32.mrb[0].mxu0
    %v289 = vpop.f32.mrb[0].mxu0
    %v290 = vpop.f32.mrb[0].mxu0
    %291 = vdwg.mxu0
    %292 = vst [vmem:[#allocation7] sm:$0xff] %v287
    // Predicated region
    $region30: #{tpu_custom_call.1} parent=1 // pred_check
      _
    $region31: #{tpu_custom_call.1} parent=1 // pred_check_branch
      %294 = sbr.rel (0) target = $region33
    $region32: #{tpu_custom_call.1} parent=1 // pred_region
      %s296 = ssub.s32 128, 128
      %297 = vsyncadd [#allocation4], %s296
      %s299 = sshll.u32 [#allocation7], 4
      %s300 = int_to_ptr.vmem [resolvable:$true] %s299
      %302 = dma.vmem_to_hbm [thread:$0]  %s300, 128, %s5, [#allocation4]
    $region33: #{tpu_custom_call.1} parent=1 // pred_fallthru
      _
    // Predicated region
    $region34: #{tpu_custom_call.1} parent=1 // pred_check
      _
    $region35: #{tpu_custom_call.1} parent=1 // pred_check_branch
      %304 = sbr.rel (0) target = $region37
    $region36: #{tpu_custom_call.1} parent=1 // pred_region
      %305 = dma.done [#allocation4], 128
    $region37: #{tpu_custom_call.1} parent=1 // pred_fallthru
      _
    %306 = vsyncpa [#allocation3], 1
    %307 = vsyncpa [#allocation6], 1
    %308 = vsyncpa [#allocation4], 1

</llo_original>
